<compile_context>
chip_gen: v7x
topology: tpu7x:2x2x1
jax: 0.10.0
libtpu: 0.0.40
codegen_flags: <defaults>
</compile_context>

<pallas_src>
import functools

import jax
import jax.numpy as jnp
import numpy as np
from jax.experimental import pallas as pl
from jax.experimental.pallas import tpu as pltpu

C_IN = 608          # channel count of x.view(-1, 608)
H1 = 256            # resnet hidden width
BN_EPS = 1e-5
LEAKY_SLOPE = 0.2
HI = jax.lax.Precision.HIGHEST


def _leaky(v):
    return jnp.where(v > 0, v, LEAKY_SLOPE * v)


def _cdiv(a, b):
    return -(-a // b)


def _round_up(n, m):
    return _cdiv(n, m) * m


# ----------------------------------------------------------------------------
# Kernel: one batch tile -> sigmoid(x @ v + c)
# ----------------------------------------------------------------------------
def disc_kernel(x_ref, v_ref, c_ref, out_ref):
    # x_ref: (tb, 608) f32, v_ref: (608, 1) f32, c_ref: (1, 1) f32.
    z = jnp.dot(x_ref[...], v_ref[...],
                preferred_element_type=jnp.float32)          # (tb, 1) MXU GEMV
    out_ref[...] = jax.nn.sigmoid(z + c_ref[...]).astype(out_ref.dtype)


# ----------------------------------------------------------------------------
# Host-side, one-time fold of the constant conv branch + the two Linears
# ----------------------------------------------------------------------------
def prepare_params(p):
    """Fold the batch-independent conv/BN branch and the Linear/Linear pair.

    conv1/conv2 outputs are structurally zero (bias-free taps on zero
    padding), so with inference-semantics BN the branch output is the constant
    row  y = leaky(leaky(leaky(bn1b) @ w3 * bn2s + bn2b) @ w4 * bn3s + bn3b) @ w5.
    Both positions of conv2's length-2 output carry the same constant, and
    conv3 (stride 2) keeps position 0, so a single (1, C) row is exact.
    """
    a2 = _leaky(p["bn1b"])                                                # (1, 128)
    a3 = _leaky(jnp.dot(a2, p["w3"], precision=HI) * p["bn2s"] + p["bn2b"])  # (1, 256)
    a4 = _leaky(jnp.dot(a3, p["w4"], precision=HI) * p["bn3s"] + p["bn3b"])  # (1, 512)
    y_const = jnp.dot(a4, p["w5"], precision=HI)                          # (1, 256)

    # No nonlinearity between the two Linears -> fold them.
    v = jnp.dot(p["l1w"][:C_IN], p["l2w"], precision=HI)                  # (608, 1)
    c = (jnp.dot(jnp.dot(y_const, p["l1w"][C_IN:], precision=HI) + p["l1b"],
                 p["l2w"], precision=HI)
         + p["l2b"])                                                      # (1, 1)
    return v.astype(jnp.float32), c.astype(jnp.float32)


# ----------------------------------------------------------------------------
# Wrapper: batch-tiled pallas_call (pure x-stream)
# ----------------------------------------------------------------------------
@functools.partial(jax.jit, static_argnames=("tile_b",))
def discriminator_meas(x, v, c, *, tile_b=2048):
    """x: (B, 608) float32 == x.view(-1, 608) of the PyTorch module.

    tile_b is chosen for DMA amortization, not MXU shape: at tb=2048 an x tile
    is ~5 MB (~10 MB double-buffered), inside v5e's 16 MiB default scoped VMEM
    and v6e/v7x's 32 MiB.  tb is additionally capped at ceil(B/2) (rounded to
    8) so the 1-D grid has >= 2 steps and v7x's two TensorCores both get work.
    Partial boundary tiles are fine: the computation is row-independent and
    Pallas masks out-of-range output writes.
    """
    B = x.shape[0]
    x = x.astype(jnp.float32)
    tb = min(tile_b, max(8, _round_up(_cdiv(B, 2), 8)))
    grid = _cdiv(B, tb)

    return pl.pallas_call(
        disc_kernel,
        out_shape=jax.ShapeDtypeStruct((B, 1), jnp.float32),
        grid=(grid,),
        in_specs=[
            pl.BlockSpec((tb, C_IN), lambda i: (i, 0)),   # x tile (streamed)
            pl.BlockSpec((C_IN, 1), lambda i: (0, 0)),    # folded weight vector
            pl.BlockSpec((1, 1), lambda i: (0, 0)),       # folded scalar bias
        ],
        out_specs=pl.BlockSpec((tb, 1), lambda i: (i, 0)),
        compiler_params=pltpu.CompilerParams(
            dimension_semantics=("parallel",)),
    )(x, v, c)


# ----------------------------------------------------------------------------
# Synthetic parameters (PyTorch shapes, stored transposed as (in, out), f32)
# ----------------------------------------------------------------------------
def init_params(key):
    ks = jax.random.split(key, 9)

    def w(k, cin, cout, scale=0.05):
        return (scale * jax.random.normal(k, (cin, cout))).astype(jnp.float32)

    params = dict(
        w1=w(ks[0], 608, 64),     # Conv1d(608, 64, k=1)  weight.T
        w2=w(ks[1], 64, 128),     # Conv1d(64, 128, k=1)  weight.T
        w3=w(ks[2], 128, 256),    # Conv1d(128, 256, k=1) weight.T
        w4=w(ks[3], 256, 512),    # Conv1d(256, 512, k=1) weight.T
        w5=w(ks[4], 512, 256),    # Conv1d(512, 256, k=1) weight.T
        l1w=w(ks[5], 864, 256),   # Linear(864, 256) weight.T
        l1b=(0.05 * jax.random.normal(ks[6], (1, 256))).astype(jnp.float32),
        l2w=w(ks[7], 256, 1),     # Linear(256, 1) weight.T
        l2b=(0.05 * jax.random.normal(ks[8], (1, 1))).astype(jnp.float32),
    )
    # BatchNorm1d default init: gamma=1, beta=0, running_mean=0, running_var=1.
    inv = 1.0 / np.sqrt(1.0 + BN_EPS)
    for name, ch in (("bn1", 128), ("bn2", 256), ("bn3", 512)):
        params[name + "s"] = jnp.full((1, ch), inv, jnp.float32)   # gamma/sqrt(var+eps)
        params[name + "b"] = jnp.zeros((1, ch), jnp.float32)       # beta - mean*scale
    return params


# ----------------------------------------------------------------------------
# Pure-JAX reference of the ORIGINAL (unfolded) forward in full f32.
# ----------------------------------------------------------------------------
def reference(x, p):
    B = x.shape[0]
    # net branch on x.view(-1, 608, 1): conv1's stride-2 taps hit only padding
    # (bias=False) -> zero; conv2's surviving taps are padding / zeros -> zero;
    # BN (inference stats) + LeakyReLU then make it a batch-independent
    # constant; lengths 2 -> 1 -> 1 -> 1, Flatten -> (B, 256).
    h2 = jnp.zeros((B, 128), jnp.float32)
    a2 = _leaky(h2 * p["bn1s"] + p["bn1b"])
    a3 = _leaky(jnp.dot(a2, p["w3"], precision=HI) * p["bn2s"] + p["bn2b"])
    a4 = _leaky(jnp.dot(a3, p["w4"], precision=HI) * p["bn3s"] + p["bn3b"])
    y = jnp.dot(a4, p["w5"], precision=HI)                         # (B, 256)

    res = jnp.concatenate([x, y], axis=1)                          # (B, 864)
    z1 = jnp.dot(res, p["l1w"], precision=HI) + p["l1b"]
    z2 = jnp.dot(z1, p["l2w"], precision=HI) + p["l2b"]
    return jax.nn.sigmoid(z2)


if __name__ == "__main__":
    key = jax.random.PRNGKey(0)
    kx, kp = jax.random.split(key)
    B = 32
    x = jax.random.normal(kx, (B, C_IN), dtype=jnp.float32)   # == x.view(-1, 608)
    params = init_params(kp)

    # One-time host-side fold of the constant conv branch + the two Linears.
    v, c = prepare_params(params)

    out = discriminator_meas(x, v, c)
    out = jax.block_until_ready(out)

    ref = reference(x, params)
    np.testing.assert_allclose(np.asarray(out), np.asarray(ref),
                               rtol=1e-4, atol=1e-4)
    assert out.shape == (B, 1)
    print("KERNEL_OK")
</pallas_src>

<mosaic_0001>
module attributes {stable_mosaic.version = 11 : i64} {
  func.func @disc_kernel(%arg0: i32, %arg1: memref<16x608xf32, #tpu.memory_space<vmem>>, %arg2: memref<608x1xf32, #tpu.memory_space<vmem>>, %arg3: memref<1x1xf32, #tpu.memory_space<vmem>>, %arg4: memref<16x1xf32, #tpu.memory_space<vmem>>) attributes {dimension_semantics = [#tpu.dimension_semantics<parallel>], iteration_bounds = array<i64: 2>, scalar_prefetch = 0 : i64, scratch_operands = 0 : i64, tpu.core_type = #tpu.core_type<tc>, window_params = [{transform_indices = @transform_0, window_bounds = array<i64: 16, 608>}, {pipeline_mode = #tpu.pipeline_mode<synchronous>, transform_indices = @transform_1, window_bounds = array<i64: 608, 1>}, {pipeline_mode = #tpu.pipeline_mode<synchronous>, transform_indices = @transform_2, window_bounds = array<i64: 1, 1>}, {transform_indices = @transform_3, window_bounds = array<i64: 16, 1>}]} {
    %c0 = arith.constant 0 : index
    %c0_0 = arith.constant 0 : index
    %0 = vector.load %arg1[%c0, %c0_0] : memref<16x608xf32, #tpu.memory_space<vmem>>, vector<16x608xf32>
    %c0_1 = arith.constant 0 : index
    %c0_2 = arith.constant 0 : index
    %1 = vector.load %arg2[%c0_1, %c0_2] : memref<608x1xf32, #tpu.memory_space<vmem>>, vector<608x1xf32>
    %cst = arith.constant dense<0.000000e+00> : vector<16x1xf32>
    %2 = tpu.matmul %0, %1, %cst {dimension_numbers = #tpu.dot_dimension_numbers<[1], [0], [0], [1], [0, 0, 1, 1], [], []>} : vector<16x608xf32>, vector<608x1xf32>, vector<16x1xf32> -> vector<16x1xf32>
    %c0_3 = arith.constant 0 : index
    %c0_4 = arith.constant 0 : index
    %3 = vector.load %arg3[%c0_3, %c0_4] : memref<1x1xf32, #tpu.memory_space<vmem>>, vector<1x1xf32>
    %4 = vector.broadcast %3 : vector<1x1xf32> to vector<16x1xf32>
    %5 = arith.addf %2, %4 : vector<16x1xf32>
    %6 = arith.negf %5 : vector<16x1xf32>
    %7 = math.exp %6 : vector<16x1xf32>
    %cst_5 = arith.constant 1.000000e+00 : f32
    %8 = vector.broadcast %cst_5 : f32 to vector<16x1xf32>
    %9 = arith.addf %8, %7 : vector<16x1xf32>
    %10 = arith.divf %8, %9 : vector<16x1xf32>
    %c0_6 = arith.constant 0 : index
    %c0_7 = arith.constant 0 : index
    %11 = vector.load %arg4[%c0_6, %c0_7] : memref<16x1xf32, #tpu.memory_space<vmem>>, vector<16x1xf32>
    tpu.vector_store %arg4[%c0_6, %c0_7], %10 {strides = array<i32>} : memref<16x1xf32, #tpu.memory_space<vmem>>, vector<16x1xf32>,
    return
  }
  func.func @transform_0(%arg0: i32) -> (i32, i32) {
    %c0_i32 = arith.constant 0 : i32
    %c0_i32_0 = arith.constant 0 : i32
    return %arg0, %c0_i32 : i32, i32
  }
  func.func @transform_1(%arg0: i32) -> (i32, i32) {
    %c0_i32 = arith.constant 0 : i32
    %c0_i32_0 = arith.constant 0 : i32
    %c0_i32_1 = arith.constant 0 : i32
    return %c0_i32, %c0_i32_0 : i32, i32
  }
  func.func @transform_2(%arg0: i32) -> (i32, i32) {
    %c0_i32 = arith.constant 0 : i32
    %c0_i32_0 = arith.constant 0 : i32
    %c0_i32_1 = arith.constant 0 : i32
    return %c0_i32, %c0_i32_0 : i32, i32
  }
  func.func @transform_3(%arg0: i32) -> (i32, i32) {
    %c0_i32 = arith.constant 0 : i32
    %c0_i32_0 = arith.constant 0 : i32
    return %arg0, %c0_i32 : i32, i32
  }
}

</mosaic_0001>

<llo_original>
// kernel: discriminator_meas.1
$region0: #{discriminator_meas.1}
  #allocation0 [shape = 'u32[]', space=smem, size = 0x4, offset = 0x4, fixed_abs, tag = 'smem constant byte address 0x4 - core index']
  #allocation1 [shape = 'u32[144,128]{1,0:T(1,128)}', space=vmem, size = 0x12000, scoped, tag = 'internal scratch']
  #allocation2 [shape = 'f32[1,1]{1,0:T(1,128)S(1)}', space=vmem, size = 0x200, scoped, tag = 'scoped memory for discriminator_meas.1']
  %s0 = inlined_call_operand.vmem [shape: f32[32,608], index: 0, kind: input, shape index: {}]
  %s1 = inlined_call_operand.vmem [shape: f32[608,1], index: 1, kind: input, shape index: {}]
  %s2 = inlined_call_operand.<no memory space> [shape: f32[1,1], index: 2, kind: input, shape index: {}]
  %s3 = inlined_call_operand.vmem [shape: f32[32,1], index: 3, kind: output, shape index: {}]
  %s4 = sld [smem:[#allocation0]]
  $region45: #{discriminator_meas.1} parent=0
    _
  %s6 = ssub.s32 1, %s4
  %s7 = scalar_select 0, %s6, %s4
  %v8 = vstv %s2
  %9 = vst [vmem:[#allocation2] sm:$0x1] %v8
  loop: start=0, step=1, limit=4
  $region2: #{discriminator_meas.1} parent=0 // loop_pre_header
    _
  $region3: #{discriminator_meas.1} parent=0 // loop_header
    %s11 = sphi 0, %s15
    %p12 = scmp.ge.s32.totalorder %s11, 4
    %s21 = sphi 0, %s23
    %s24 = sphi 0, %s21
    %s25 = sphi 0, %s24
    %s41 = sphi 0, %s25
    %s45 = sphi 0, %s45
    %s47 = sphi 0, %s45
    %s48 = sphi 0, %s47
    %s62 = sphi 0, %s48
    %s66 = sphi 0, %s66
    %s68 = sphi 0, %s66
    %s69 = sphi 0, %s68
    %s83 = sphi 0, %s69
    %s89 = sphi 0, %s91
    %s92 = sphi 0, %s89
    %s93 = sphi 0, %s92
    %s109 = sphi 0, %s93
  $region4: #{discriminator_meas.1} parent=0 // loop_header_branch
    %14 = sbr.rel (%p12) target = $region8
  $region5: #{discriminator_meas.1} parent=0 // loop_body
    %s16 = ssub.s32 %s11, 1
    %s17 = ssub.s32 %s11, 2
    %s18 = sadd.s32 %s11, 1
    %s19 = ssub.s32 %s11, %s18
    %p20 = scmp.eq.s32.totalorder %s19, 0
    %s22 = sadd.s32 %s21, 1
    %s23 = scalar_select %p20, %s21, %s22
    %p26 = pneg %p20
    %p27 = scmp.eq.s32.totalorder %s11, 1
    %p28 = por %p26, %p27
    %p29 = scmp.ne.s32.totalorder %s21, %s24
    %p30 = scmp.eq.s32.totalorder %s11, 0
    %p31 = por %p29, %p30
    %p32 = scmp.ne.s32.totalorder %s21, %s24
    %p33 = scmp.eq.s32.totalorder %s16, 1
    %p34 = por %p32, %p33
    %p35 = scmp.ne.s32.totalorder %s24, %s25
    %p36 = scmp.eq.s32.totalorder %s16, 0
    %p37 = por %p35, %p36
    %p38 = scmp.ne.s32.totalorder %s24, %s25
    %p39 = scmp.eq.s32.totalorder %s17, 1
    %p40 = por %p38, %p39
    %p42 = scmp.ne.s32.totalorder %s25, %s41
    %p43 = scmp.eq.s32.totalorder %s17, 0
    %p44 = por %p42, %p43
    %s46 = sadd.s32 %s45, 1
    %p49 = scmp.eq.s32.totalorder %s11, 1
    %p50 = scmp.ne.s32.totalorder %s45, %s47
    %p51 = scmp.eq.s32.totalorder %s11, 0
    %p52 = por %p50, %p51
    %p53 = scmp.ne.s32.totalorder %s45, %s47
    %p54 = scmp.eq.s32.totalorder %s16, 1
    %p55 = por %p53, %p54
    %p56 = scmp.ne.s32.totalorder %s47, %s48
    %p57 = scmp.eq.s32.totalorder %s16, 0
    %p58 = por %p56, %p57
    %p59 = scmp.ne.s32.totalorder %s47, %s48
    %p60 = scmp.eq.s32.totalorder %s17, 1
    %p61 = por %p59, %p60
    %p63 = scmp.ne.s32.totalorder %s48, %s62
    %p64 = scmp.eq.s32.totalorder %s17, 0
    %p65 = por %p63, %p64
    %s67 = sadd.s32 %s66, 1
    %p70 = scmp.eq.s32.totalorder %s11, 1
    %p71 = scmp.ne.s32.totalorder %s66, %s68
    %p72 = scmp.eq.s32.totalorder %s11, 0
    %p73 = por %p71, %p72
    %p74 = scmp.ne.s32.totalorder %s66, %s68
    %p75 = scmp.eq.s32.totalorder %s16, 1
    %p76 = por %p74, %p75
    %p77 = scmp.ne.s32.totalorder %s68, %s69
    %p78 = scmp.eq.s32.totalorder %s16, 0
    %p79 = por %p77, %p78
    %p80 = scmp.ne.s32.totalorder %s68, %s69
    %p81 = scmp.eq.s32.totalorder %s17, 1
    %p82 = por %p80, %p81
    %p84 = scmp.ne.s32.totalorder %s69, %s83
    %p85 = scmp.eq.s32.totalorder %s17, 0
    %p86 = por %p84, %p85
    %s87 = ssub.s32 %s11, %s18
    %p88 = scmp.eq.s32.totalorder %s87, 0
    %s90 = sadd.s32 %s89, 1
    %s91 = scalar_select %p88, %s89, %s90
    %p94 = pneg %p88
    %p95 = scmp.eq.s32.totalorder %s11, 1
    %p96 = por %p94, %p95
    %p97 = scmp.ne.s32.totalorder %s89, %s92
    %p98 = scmp.eq.s32.totalorder %s11, 0
    %p99 = por %p97, %p98
    %p100 = scmp.ne.s32.totalorder %s89, %s92
    %p101 = scmp.eq.s32.totalorder %s16, 1
    %p102 = por %p100, %p101
    %p103 = scmp.ne.s32.totalorder %s92, %s93
    %p104 = scmp.eq.s32.totalorder %s16, 0
    %p105 = por %p103, %p104
    %p106 = scmp.ne.s32.totalorder %s92, %s93
    %p107 = scmp.eq.s32.totalorder %s17, 1
    %p108 = por %p106, %p107
    %p110 = scmp.ne.s32.totalorder %s93, %s109
    %p111 = scmp.eq.s32.totalorder %s17, 0
    %p112 = por %p110, %p111
    %p113 = scmp.le.s32.totalorder 1, %s11
    %p114 = scmp.lt.s32.totalorder %s11, 3
    %p115 = pnand %p113, %p114
    %p116 = pneg %p115
    // Predicated region
    $region9: #{discriminator_meas.1} parent=5 // pred_check
      _
    $region10: #{discriminator_meas.1} parent=5 // pred_check_branch
      %118 = sbr.rel (%p115) target = $region12
    $region11: #{discriminator_meas.1} parent=5 // pred_region
      %s119 = ssub.s32 %s11, 1
      // Predicated region
      $region13: #{discriminator_meas.1} parent=11 // pred_check
        %p120 = pneg %p58
      $region14: #{discriminator_meas.1} parent=11 // pred_check_branch
        %122 = sbr.rel (%p120) target = $region16
      $region15: #{discriminator_meas.1} parent=11 // pred_region
        _
      $region16: #{discriminator_meas.1} parent=11 // pred_fallthru
        _
      // Predicated region
      $region17: #{discriminator_meas.1} parent=11 // pred_check
        %p123 = pneg %p79
      $region18: #{discriminator_meas.1} parent=11 // pred_check_branch
        %125 = sbr.rel (%p123) target = $region20
      $region19: #{discriminator_meas.1} parent=11 // pred_region
        _
      $region20: #{discriminator_meas.1} parent=11 // pred_fallthru
        _
    $region12: #{discriminator_meas.1} parent=5 // pred_fallthru
      _
    %p126 = scmp.lt.s32.totalorder %s11, 2
    // Predicated region
    $region21: #{discriminator_meas.1} parent=5 // pred_check
      %p127 = pneg %p126
    $region22: #{discriminator_meas.1} parent=5 // pred_check_branch
      %129 = sbr.rel (%p127) target = $region24
    $region23: #{discriminator_meas.1} parent=5 // pred_region
      // Predicated region
      $region25: #{discriminator_meas.1} parent=23 // pred_check
        %p130 = pneg %p31
      $region26: #{discriminator_meas.1} parent=23 // pred_check_branch
        %132 = sbr.rel (%p130) target = $region28
      $region27: #{discriminator_meas.1} parent=23 // pred_region
        %s133 = smul.u32 2, %s11
        %p134 = scmp.lt.s32.totalorder %s133, 3
        %s135 = scalar_select %p134, %s133, 3
        %s136 = smul.addr %s135, 5
        %s137 = smul.addr %s136, 8
        %s138 = scalar_lea.vmem %s0, %s137
        %s139 = smul.u32 2, %s11
      $region28: #{discriminator_meas.1} parent=23 // pred_fallthru
        _
    $region24: #{discriminator_meas.1} parent=5 // pred_fallthru
      _
    %p140 = scmp.le.s32.totalorder 1, %s11
    %p141 = scmp.lt.s32.totalorder %s11, 3
    %p142 = pnand %p140, %p141
    %p143 = pneg %p142
    // Predicated region
    $region29: #{discriminator_meas.1} parent=5 // pred_check
      _
    $region30: #{discriminator_meas.1} parent=5 // pred_check_branch
      %145 = sbr.rel (%p142) target = $region32
    $region31: #{discriminator_meas.1} parent=5 // pred_region
      %s146 = ssub.s32 %s11, 1
      %s147 = smul.u32 2, %s16
      %p148 = scmp.lt.s32.totalorder %s147, 3
      %s149 = scalar_select %p148, %s147, 3
      %s150 = smul.addr %s149, 5
      %s151 = smul.addr %s150, 8
      %s152 = scalar_lea.vmem %s0, %s151
      %p153 = pneg %p37
      %p154 = pneg %p34
      %p155 = pneg %p58
      %p156 = pneg %p55
      %p157 = pneg %p79
      %p158 = pneg %p76
      %p159 = pneg %p105
      %p160 = pneg %p102
      %s161 = smul.u32 2, %s16
      %p162 = scmp.lt.s32.totalorder %s161, 3
      %s163 = scalar_select %p162, %s161, 3
      %s164 = smul.addr %s163, 8
      %s165 = scalar_lea.vmem %s3, %s164
      %s166 = smul.u32 2, %s16
      %p167 = scmp.lt.s32.totalorder %s166, 3
      %s168 = scalar_select %p167, %s166, 3
      %s169 = smul.addr %s168, 5
      %s170 = smul.addr %s169, 8
      %s171 = scalar_lea.vmem %s0, %s170
      %s172 = smul.u32 2, %s16
      %s173 = smul.u32 2, %s16
      %p174 = scmp.lt.s32.totalorder %s173, 3
      %s175 = scalar_select %p174, %s173, 3
      %s176 = smul.addr %s175, 8
      %s177 = scalar_lea.vmem %s3, %s176
      %s178 = smul.u32 2, %s16
      %v179 = vld [vmem:[%s171] sm:$0xff]
      %v180 = vld [vmem:[%s171 + $0x8] sm:$0xff]
      %v181 = vld [vmem:[%s171 + $0x10] sm:$0xff]
      %v182 = vld [vmem:[%s171 + $0x18] sm:$0xff]
      %v183 = vld [vmem:[%s171 + $0x20] sm:$0xff]
      %v184 = vld [vmem:[%s171 + $0x28] sm:$0xff]
      %v185 = vld [vmem:[%s171 + $0x30] sm:$0xff]
      %v186 = vld [vmem:[%s171 + $0x38] sm:$0xff]
      %v187 = vld [vmem:[%s171 + $0x40] sm:$0xff]
      %v188 = vld [vmem:[%s171 + $0x48] sm:$0xff]
      %v189 = vld [vmem:[%s1] sm:$0xff]
      %v190 = vld [vmem:[%s1 + $0x8] sm:$0xff]
      %v191 = vld [vmem:[%s1 + $0x10] sm:$0xff]
      %v192 = vld [vmem:[%s1 + $0x18] sm:$0xff]
      %v193 = vld [vmem:[%s1 + $0x20] sm:$0xff]
      %v194 = vld [vmem:[%s1 + $0x28] sm:$0xff]
      %v195 = vld [vmem:[%s1 + $0x30] sm:$0xff]
      %v196 = vld [vmem:[%s1 + $0x38] sm:$0xff]
      %v197 = vld [vmem:[%s1 + $0x40] sm:$0xff]
      %v198 = vld [vmem:[%s1 + $0x48] sm:$0xff]
      %v199 = vld [vmem:[%s1 + $0x50] sm:$0xff]
      %v200 = vld [vmem:[%s1 + $0x58] sm:$0xff]
      %v201 = vld [vmem:[%s1 + $0x60] sm:$0xff]
      %v202 = vld [vmem:[%s1 + $0x68] sm:$0xff]
      %v203 = vld [vmem:[%s1 + $0x70] sm:$0xff]
      %v204 = vld [vmem:[%s1 + $0x78] sm:$0xff]
      %v205 = vld [vmem:[%s1 + $0x80] sm:$0xff]
      %v206 = vld [vmem:[%s1 + $0x88] sm:$0xff]
      %v207 = vld [vmem:[%s1 + $0x90] sm:$0xff]
      %v208 = vld [vmem:[%s1 + $0x98] sm:$0xff]
      %v209 = vld [vmem:[%s1 + $0xa0] sm:$0xff]
      %v210 = vld [vmem:[%s1 + $0xa8] sm:$0xff]
      %v211 = vld [vmem:[%s1 + $0xb0] sm:$0xff]
      %v212 = vld [vmem:[%s1 + $0xb8] sm:$0xff]
      %v213 = vld [vmem:[%s1 + $0xc0] sm:$0xff]
      %v214 = vld [vmem:[%s1 + $0xc8] sm:$0xff]
      %v215 = vld [vmem:[%s1 + $0xd0] sm:$0xff]
      %v216 = vld [vmem:[%s1 + $0xd8] sm:$0xff]
      %v217 = vld [vmem:[%s1 + $0xe0] sm:$0xff]
      %v218 = vld [vmem:[%s1 + $0xe8] sm:$0xff]
      %v219 = vld [vmem:[%s1 + $0xf0] sm:$0xff]
      %v220 = vld [vmem:[%s1 + $0xf8] sm:$0xff]
      %v221 = vld [vmem:[%s1 + $0x100] sm:$0xff]
      %v222 = vld [vmem:[%s1 + $0x108] sm:$0xff]
      %v223 = vld [vmem:[%s1 + $0x110] sm:$0xff]
      %v224 = vld [vmem:[%s1 + $0x118] sm:$0xff]
      %v225 = vld [vmem:[%s1 + $0x120] sm:$0xff]
      %v226 = vld [vmem:[%s1 + $0x128] sm:$0xff]
      %v227 = vld [vmem:[%s1 + $0x130] sm:$0xff]
      %v228 = vld [vmem:[%s1 + $0x138] sm:$0xff]
      %v229 = vld [vmem:[%s1 + $0x140] sm:$0xff]
      %v230 = vld [vmem:[%s1 + $0x148] sm:$0xff]
      %v231 = vld [vmem:[%s1 + $0x150] sm:$0xff]
      %v232 = vld [vmem:[%s1 + $0x158] sm:$0xff]
      %v233 = vld [vmem:[%s1 + $0x160] sm:$0xff]
      %v234 = vld [vmem:[%s1 + $0x168] sm:$0xff]
      %v235 = vld [vmem:[%s1 + $0x170] sm:$0xff]
      %v236 = vld [vmem:[%s1 + $0x178] sm:$0xff]
      %v237 = vld [vmem:[%s1 + $0x180] sm:$0xff]
      %v238 = vld [vmem:[%s1 + $0x188] sm:$0xff]
      %v239 = vld [vmem:[%s1 + $0x190] sm:$0xff]
      %v240 = vld [vmem:[%s1 + $0x198] sm:$0xff]
      %v241 = vld [vmem:[%s1 + $0x1a0] sm:$0xff]
      %v242 = vld [vmem:[%s1 + $0x1a8] sm:$0xff]
      %v243 = vld [vmem:[%s1 + $0x1b0] sm:$0xff]
      %v244 = vld [vmem:[%s1 + $0x1b8] sm:$0xff]
      %v245 = vld [vmem:[%s1 + $0x1c0] sm:$0xff]
      %v246 = vld [vmem:[%s1 + $0x1c8] sm:$0xff]
      %v247 = vld [vmem:[%s1 + $0x1d0] sm:$0xff]
      %v248 = vld [vmem:[%s1 + $0x1d8] sm:$0xff]
      %v249 = vld [vmem:[%s1 + $0x1e0] sm:$0xff]
      %v250 = vld [vmem:[%s1 + $0x1e8] sm:$0xff]
      %v251 = vld [vmem:[%s1 + $0x1f0] sm:$0xff]
      %v252 = vld [vmem:[%s1 + $0x1f8] sm:$0xff]
      %v253 = vld [vmem:[%s1 + $0x200] sm:$0xff]
      %v254 = vld [vmem:[%s1 + $0x208] sm:$0xff]
      %v255 = vld [vmem:[%s1 + $0x210] sm:$0xff]
      %v256 = vld [vmem:[%s1 + $0x218] sm:$0xff]
      %v257 = vld [vmem:[%s1 + $0x220] sm:$0xff]
      %v258 = vld [vmem:[%s1 + $0x228] sm:$0xff]
      %v259 = vld [vmem:[%s1 + $0x230] sm:$0xff]
      %v260 = vld [vmem:[%s1 + $0x238] sm:$0xff]
      %v261 = vld [vmem:[%s1 + $0x240] sm:$0xff]
      %v262 = vld [vmem:[%s1 + $0x248] sm:$0xff]
      %v263 = vld [vmem:[%s1 + $0x250] sm:$0xff]
      %v264 = vld [vmem:[%s1 + $0x258] sm:$0xff]
      %v265 = vld [vmem:[#allocation2] sm:$0x1]
      %v267 = vlaneseq
      %v268 = vshrl.u32 %v267, 7
      %v269 = vsub.s32 0, %v268
      %v270 = vrot.slane %v265, %v269
      %vm272 = vcmask 785408
      %v274 = vsel %vm272, %v183, 0
      %v277 = vsel %vm272, %v188, 0
      %279 = vmatprep.subr.mxu0 0.0
      %280 = vmatpush1.msra.mxu0 %v189
      %281 = vmatprep.subr.mxu0 0.0
      %282 = vmatpush1.msra.mxu0 %v190
      %283 = vmatprep.subr.mxu0 0.0
      %284 = vmatpush1.msra.mxu0 %v191
      %285 = vmatprep.subr.mxu0 0.0
      %286 = vmatpush1.msra.mxu0 %v192
      %287 = vmatprep.subr.mxu0 0.0
      %288 = vmatpush1.msra.mxu0 %v193
      %289 = vmatprep.subr.mxu0 0.0
      %290 = vmatpush1.msra.mxu0 %v194
      %291 = vmatprep.subr.mxu0 0.0
      %292 = vmatpush1.msra.mxu0 %v195
      %293 = vmatprep.subr.mxu0 0.0
      %294 = vmatpush1.msra.mxu0 %v196
      %295 = vmatprep.subr.mxu0 0.0
      %296 = vmatpush1.msra.mxu0 %v197
      %297 = vmatprep.subr.mxu0 0.0
      %298 = vmatpush1.msra.mxu0 %v198
      %299 = vmatprep.subr.mxu0 0.0
      %300 = vmatpush1.msra.mxu0 %v199
      %301 = vmatprep.subr.mxu0 0.0
      %302 = vmatpush1.msra.mxu0 %v200
      %303 = vmatprep.subr.mxu0 0.0
      %304 = vmatpush1.msra.mxu0 %v201
      %305 = vmatprep.subr.mxu0 0.0
      %306 = vmatpush1.msra.mxu0 %v202
      %307 = vmatprep.subr.mxu0 0.0
      %308 = vmatpush1.msra.mxu0 %v203
      %309 = vmatprep.subr.mxu0 0.0
      %310 = vmatpush1.msra.mxu0 %v204
      %311 = vmatprep.subr.mxu0 0.0
      %312 = vmatpush1.msra.mxu0 %v205
      %313 = vmatprep.subr.mxu0 0.0
      %314 = vmatpush1.msra.mxu0 %v206
      %315 = vmatprep.subr.mxu0 0.0
      %316 = vmatpush1.msra.mxu0 %v207
      %317 = vmatprep.subr.mxu0 0.0
      %318 = vmatpush1.msra.mxu0 %v208
      %319 = vmatprep.subr.mxu0 0.0
      %320 = vmatpush1.msra.mxu0 %v209
      %321 = vmatprep.subr.mxu0 0.0
      %322 = vmatpush1.msra.mxu0 %v210
      %323 = vmatprep.subr.mxu0 0.0
      %324 = vmatpush1.msra.mxu0 %v211
      %325 = vmatprep.subr.mxu0 0.0
      %326 = vmatpush1.msra.mxu0 %v212
      %327 = vmatprep.subr.mxu0 0.0
      %328 = vmatpush1.msra.mxu0 %v213
      %329 = vmatprep.subr.mxu0 0.0
      %330 = vmatpush1.msra.mxu0 %v214
      %331 = vmatprep.subr.mxu0 0.0
      %332 = vmatpush1.msra.mxu0 %v215
      %333 = vmatprep.subr.mxu0 0.0
      %334 = vmatpush1.msra.mxu0 %v216
      %335 = vmatprep.subr.mxu0 0.0
      %336 = vmatpush1.msra.mxu0 %v217
      %337 = vmatprep.subr.mxu0 0.0
      %338 = vmatpush1.msra.mxu0 %v218
      %339 = vmatprep.subr.mxu0 0.0
      %340 = vmatpush1.msra.mxu0 %v219
      %341 = vmatprep.subr.mxu0 0.0
      %342 = vmatpush1.msra.mxu0 %v220
      %343 = vmatprep.mubr.f32.mxu0 %v180
      %344 = vmatmul.mubr.f32.gmra.mrb[0].mxu0 %v179
      %v345 = vpop.f32.mrb[0].mxu0
      %v346 = vadd.f32 %v270, %v345
      %v347 = vpop.f32.mrb[0].mxu0
      %348 = vmatprep.mubr.f32.mxu0 %v185
      %349 = vmatmul.mubr.f32.gmra.mrb[0].mxu0 %v184
      %v350 = vpop.f32.mrb[0].mxu0
      %v351 = vadd.f32 %v270, %v350
      %v352 = vpop.f32.mrb[0].mxu0
      %353 = vdwg.mxu0
      %354 = vmatprep.subr.mxu0 0.0
      %355 = vmatpush1.msra.mxu0 %v221
      %356 = vmatprep.subr.mxu0 0.0
      %357 = vmatpush1.msra.mxu0 %v222
      %358 = vmatprep.subr.mxu0 0.0
      %359 = vmatpush1.msra.mxu0 %v223
      %360 = vmatprep.subr.mxu0 0.0
      %361 = vmatpush1.msra.mxu0 %v224
      %362 = vmatprep.subr.mxu0 0.0
      %363 = vmatpush1.msra.mxu0 %v225
      %364 = vmatprep.subr.mxu0 0.0
      %365 = vmatpush1.msra.mxu0 %v226
      %366 = vmatprep.subr.mxu0 0.0
      %367 = vmatpush1.msra.mxu0 %v227
      %368 = vmatprep.subr.mxu0 0.0
      %369 = vmatpush1.msra.mxu0 %v228
      %370 = vmatprep.subr.mxu0 0.0
      %371 = vmatpush1.msra.mxu0 %v229
      %372 = vmatprep.subr.mxu0 0.0
      %373 = vmatpush1.msra.mxu0 %v230
      %374 = vmatprep.subr.mxu0 0.0
      %375 = vmatpush1.msra.mxu0 %v231
      %376 = vmatprep.subr.mxu0 0.0
      %377 = vmatpush1.msra.mxu0 %v232
      %378 = vmatprep.subr.mxu0 0.0
      %379 = vmatpush1.msra.mxu0 %v233
      %380 = vmatprep.subr.mxu0 0.0
      %381 = vmatpush1.msra.mxu0 %v234
      %382 = vmatprep.subr.mxu0 0.0
      %383 = vmatpush1.msra.mxu0 %v235
      %384 = vmatprep.subr.mxu0 0.0
      %385 = vmatpush1.msra.mxu0 %v236
      %386 = vmatprep.subr.mxu0 0.0
      %387 = vmatpush1.msra.mxu0 %v237
      %388 = vmatprep.subr.mxu0 0.0
      %389 = vmatpush1.msra.mxu0 %v238
      %390 = vmatprep.subr.mxu0 0.0
      %391 = vmatpush1.msra.mxu0 %v239
      %392 = vmatprep.subr.mxu0 0.0
      %393 = vmatpush1.msra.mxu0 %v240
      %394 = vmatprep.subr.mxu0 0.0
      %395 = vmatpush1.msra.mxu0 %v241
      %396 = vmatprep.subr.mxu0 0.0
      %397 = vmatpush1.msra.mxu0 %v242
      %398 = vmatprep.subr.mxu0 0.0
      %399 = vmatpush1.msra.mxu0 %v243
      %400 = vmatprep.subr.mxu0 0.0
      %401 = vmatpush1.msra.mxu0 %v244
      %402 = vmatprep.subr.mxu0 0.0
      %403 = vmatpush1.msra.mxu0 %v245
      %404 = vmatprep.subr.mxu0 0.0
      %405 = vmatpush1.msra.mxu0 %v246
      %406 = vmatprep.subr.mxu0 0.0
      %407 = vmatpush1.msra.mxu0 %v247
      %408 = vmatprep.subr.mxu0 0.0
      %409 = vmatpush1.msra.mxu0 %v248
      %410 = vmatprep.subr.mxu0 0.0
      %411 = vmatpush1.msra.mxu0 %v249
      %412 = vmatprep.subr.mxu0 0.0
      %413 = vmatpush1.msra.mxu0 %v250
      %414 = vmatprep.subr.mxu0 0.0
      %415 = vmatpush1.msra.mxu0 %v251
      %416 = vmatprep.subr.mxu0 0.0
      %417 = vmatpush1.msra.mxu0 %v252
      %418 = vmatprep.mubr.f32.mxu0 %v182
      %419 = vmatmul.mubr.f32.gmra.mrb[0].mxu0 %v181
      %v420 = vpop.f32.mrb[0].mxu0
      %v421 = vadd.f32 %v346, %v420
      %v422 = vpop.f32.mrb[0].mxu0
      %423 = vmatprep.mubr.f32.mxu0 %v187
      %424 = vmatmul.mubr.f32.gmra.mrb[0].mxu0 %v186
      %v425 = vpop.f32.mrb[0].mxu0
      %v426 = vadd.f32 %v351, %v425
      %v427 = vpop.f32.mrb[0].mxu0
      %428 = vdwg.mxu0
      %429 = vmatprep.subr.mxu0 0.0
      %430 = vmatpush1.msra.mxu0 %v253
      %431 = vmatprep.subr.mxu0 0.0
      %432 = vmatpush1.msra.mxu0 %v254
      %433 = vmatprep.subr.mxu0 0.0
      %434 = vmatpush1.msra.mxu0 %v255
      %435 = vmatprep.subr.mxu0 0.0
      %436 = vmatpush1.msra.mxu0 %v256
      %437 = vmatprep.subr.mxu0 0.0
      %438 = vmatpush1.msra.mxu0 %v257
      %439 = vmatprep.subr.mxu0 0.0
      %440 = vmatpush1.msra.mxu0 %v258
      %441 = vmatprep.subr.mxu0 0.0
      %442 = vmatpush1.msra.mxu0 %v259
      %443 = vmatprep.subr.mxu0 0.0
      %444 = vmatpush1.msra.mxu0 %v260
      %445 = vmatprep.subr.mxu0 0.0
      %446 = vmatpush1.msra.mxu0 %v261
      %447 = vmatprep.subr.mxu0 0.0
      %448 = vmatpush1.msra.mxu0 %v262
      %449 = vmatprep.subr.mxu0 0.0
      %450 = vmatpush1.msra.mxu0 %v263
      %451 = vmatprep.subr.mxu0 0.0
      %452 = vmatpush1.msra.mxu0 %v264
      %453 = vmatprep.subr.mxu0 0.0
      %454 = vmatpush1.msra.mxu0 0.0
      %455 = vmatprep.subr.mxu0 0.0
      %456 = vmatpush1.msra.mxu0 0.0
      %457 = vmatprep.subr.mxu0 0.0
      %458 = vmatpush1.msra.mxu0 0.0
      %459 = vmatprep.subr.mxu0 0.0
      %460 = vmatpush1.msra.mxu0 0.0
      %461 = vmatprep.subr.mxu0 0.0
      %462 = vmatpush1.msra.mxu0 0.0
      %463 = vmatprep.subr.mxu0 0.0
      %464 = vmatpush1.msra.mxu0 0.0
      %465 = vmatprep.subr.mxu0 0.0
      %466 = vmatpush1.msra.mxu0 0.0
      %467 = vmatprep.subr.mxu0 0.0
      %468 = vmatpush1.msra.mxu0 0.0
      %469 = vmatprep.subr.mxu0 0.0
      %470 = vmatpush1.msra.mxu0 0.0
      %471 = vmatprep.subr.mxu0 0.0
      %472 = vmatpush1.msra.mxu0 0.0
      %473 = vmatprep.subr.mxu0 0.0
      %474 = vmatpush1.msra.mxu0 0.0
      %475 = vmatprep.subr.mxu0 0.0
      %476 = vmatpush1.msra.mxu0 0.0
      %477 = vmatprep.subr.mxu0 0.0
      %478 = vmatpush1.msra.mxu0 0.0
      %479 = vmatprep.subr.mxu0 0.0
      %480 = vmatpush1.msra.mxu0 0.0
      %481 = vmatprep.subr.mxu0 0.0
      %482 = vmatpush1.msra.mxu0 0.0
      %483 = vmatprep.subr.mxu0 0.0
      %484 = vmatpush1.msra.mxu0 0.0
      %485 = vmatprep.subr.mxu0 0.0
      %486 = vmatpush1.msra.mxu0 0.0
      %487 = vmatprep.subr.mxu0 0.0
      %488 = vmatpush1.msra.mxu0 0.0
      %489 = vmatprep.subr.mxu0 0.0
      %490 = vmatpush1.msra.mxu0 0.0
      %491 = vmatprep.subr.mxu0 0.0
      %492 = vmatpush1.msra.mxu0 0.0
      %493 = vmatprep.mubr.f32.mxu0 0.0
      %494 = vmatmul.mubr.f32.gmra.mrb[0].mxu0 %v274
      %v495 = vpop.f32.mrb[0].mxu0
      %v496 = vadd.f32 %v421, %v495
      %v497 = vpop.f32.mrb[0].mxu0
      %498 = vmatprep.mubr.f32.mxu0 0.0
      %499 = vmatmul.mubr.f32.gmra.mrb[0].mxu0 %v277
      %v500 = vpop.f32.mrb[0].mxu0
      %v501 = vadd.f32 %v426, %v500
      %v502 = vpop.f32.mrb[0].mxu0
      %503 = vdwg.mxu0
      %v504 = vxor.u32 %v496, 2147483648
      %v505 = vxor.u32 %v501, 2147483648
      %v506 = vmul.f32 %v504, 1.442695
      %v507 = vpow.pop %v506
      %v508 = vmul.f32 %v505, 1.442695
      %v509 = vpow.pop %v508
      %v510 = vadd.f32 %v507, 1.0
      %v511 = vadd.f32 %v509, 1.0
      %v512 = vrcp.pop %v510
      %v513 = vmul.f32 1.0, %v512
      %v514 = vrcp.pop %v511
      %v515 = vmul.f32 1.0, %v514
      %vm516 = vcmask 7168
      %517 = vst.msk [vmem:[%s177] sm:$0xff] %vm516, %v513
      %518 = vst.msk [vmem:[%s177 + $0x8] sm:$0xff] %vm516, %v515
      %s519 = smul.u32 2, %s16
      %p520 = scmp.lt.s32.totalorder %s519, 3
      %s521 = scalar_select %p520, %s519, 3
      %s522 = smul.addr %s521, 8
      %s523 = scalar_lea.vmem %s3, %s522
      // Predicated region
      $region33: #{discriminator_meas.1} parent=31 // pred_check
        %p524 = pneg %p102
      $region34: #{discriminator_meas.1} parent=31 // pred_check_branch
        %526 = sbr.rel (%p524) target = $region36
      $region35: #{discriminator_meas.1} parent=31 // pred_region
        %s527 = smul.u32 2, %s16
      $region36: #{discriminator_meas.1} parent=31 // pred_fallthru
        _
    $region32: #{discriminator_meas.1} parent=5 // pred_fallthru
      _
    %p528 = scmp.le.s32.totalorder 2, %s11
    // Predicated region
    $region37: #{discriminator_meas.1} parent=5 // pred_check
      %p529 = pneg %p528
    $region38: #{discriminator_meas.1} parent=5 // pred_check_branch
      %531 = sbr.rel (%p529) target = $region40
    $region39: #{discriminator_meas.1} parent=5 // pred_region
      %s532 = ssub.s32 %s11, 2
      // Predicated region
      $region41: #{discriminator_meas.1} parent=39 // pred_check
        %p533 = pneg %p108
      $region42: #{discriminator_meas.1} parent=39 // pred_check_branch
        %535 = sbr.rel (%p533) target = $region44
      $region43: #{discriminator_meas.1} parent=39 // pred_region
        %s536 = smul.u32 2, %s17
        %p537 = scmp.lt.s32.totalorder %s536, 3
        %s538 = scalar_select %p537, %s536, 3
        %s539 = smul.addr %s538, 8
        %s540 = scalar_lea.vmem %s3, %s539
      $region44: #{discriminator_meas.1} parent=39 // pred_fallthru
        _
    $region40: #{discriminator_meas.1} parent=5 // pred_fallthru
      _
  $region6: #{discriminator_meas.1} parent=0 // loop_footer
    %s15 = sadd.s32 1, %s11
  $region7: #{discriminator_meas.1} parent=0 // loop_footer_branch
    %10 = sbr.rel target = $region3
  $region8: #{discriminator_meas.1} parent=0 // loop_exit
    _

</llo_original>
